<compile_context>
chip_gen: v6e
topology: v6e:2x2x1
jax: 0.10.0
libtpu: 0.0.40
codegen_flags: <defaults>
</compile_context>

<pallas_src>
import functools

import numpy as np
import jax
import jax.numpy as jnp
from jax.experimental import pallas as pl
from jax.experimental.pallas import tpu as pltpu


def _adaptive_bounds(in_size: int, out_size: int):
    """PyTorch adaptive-pooling window boundaries (static python ints)."""
    starts = [(i * in_size) // out_size for i in range(out_size)]
    ends = [-(-((i + 1) * in_size) // out_size) for i in range(out_size)]  # ceil
    return list(zip(starts, ends))


def _padded_bytes(shape, dtype):
    """Approximate VMEM footprint of a block after (8, 128) tile padding."""
    s = list(shape)
    s[-1] = -(-s[-1] // 128) * 128
    if len(s) >= 2:
        s[-2] = -(-s[-2] // 8) * 8
    return int(np.prod(s)) * np.dtype(dtype).itemsize


def _avg_kernel(x_ref, pwd_ref, scale_ref, o_ref, *, h_bounds, patch):
    # x_ref:     (Cblk, H, W*D)   input dtype, W*D lane-dense
    # pwd_ref:   (P*P, W*D)       exact 0/1 window-membership matrix (input dtype)
    # scale_ref: (1, P**3)        f32, 1/(kh*kw*kd) per output position
    # o_ref:     (Cblk, P**3)
    cblk, h, wd = x_ref.shape
    p2 = patch * patch
    x2 = x_ref[...].reshape(cblk * h, wd)
    # Window sums over the fused (W, D) axis on the MXU (f32 accumulation).
    y = jax.lax.dot_general(
        x2, pwd_ref[...],
        dimension_numbers=(((1,), (1,)), ((), ())),
        preferred_element_type=jnp.float32,
    ).reshape(cblk, h, p2)
    # Window sums over H (small static slices; 1/count is folded into `scale`).
    rows = [jnp.sum(y[:, hs:he, :], axis=1) for (hs, he) in h_bounds]  # P x (Cblk, P2)
    z = jnp.concatenate(rows, axis=-1)        # (Cblk, P**3), (h, w, d)-major order
    o_ref[...] = (z * scale_ref[...]).astype(o_ref.dtype)


def _max_kernel(x_ref, mask_ref, o_ref, *, h_bounds, patch):
    # x_ref:    (Cblk, H, W*D)
    # mask_ref: (P*P, W*D)  0/1 membership of each fused (W, D) window
    # o_ref:    (Cblk, P**3)
    cblk, h, wd = x_ref.shape
    p2 = patch * patch
    x = x_ref[...]                                 # no cast: max is exact in-dtype
    if jnp.issubdtype(x_ref.dtype, jnp.floating):
        neg = jnp.array(-jnp.inf, dtype=x_ref.dtype)
    else:
        neg = jnp.array(jnp.iinfo(x_ref.dtype).min, dtype=x_ref.dtype)
    # Stage 1: max over H windows (static sublane slices).
    y = jnp.stack([jnp.max(x[:, hs:he, :], axis=1) for (hs, he) in h_bounds],
                  axis=1)                          # (Cblk, P, W*D)
    # Stage 2: masked max over fused (W, D) windows (lane reductions).
    cols = []
    for q in range(p2):
        m = (mask_ref[q:q + 1, :] > 0)[:, None, :]          # (1, 1, W*D)
        cols.append(jnp.max(jnp.where(m, y, neg), axis=-1))  # (Cblk, P)
    z = jnp.stack(cols, axis=2).reshape(cblk, patch * p2)     # (h, w, d)-major
    o_ref[...] = z.astype(o_ref.dtype)


def pool_embedding(x, patch: int, mode: str = "avg",
                   block_target_bytes: int = 4 * 1024 * 1024):
    """Adaptive 3-D pool to (patch,)*3 + rearrange: (B, C, H, W, D) -> (B, patch**3, C)."""
    assert mode in ("avg", "max")
    B, C, H, W, D = x.shape
    P = patch
    P2, P3 = P * P, P * P * P
    WD = W * D

    h_bounds = _adaptive_bounds(H, P)
    w_bounds = _adaptive_bounds(W, P)
    d_bounds = _adaptive_bounds(D, P)

    # ---- wrapper-side layout plumbing: fuse W and D so the lane axis is wide.
    x4 = x.reshape(B, C, H, WD)

    # ---- static 0/1 pooling/membership matrix over the fused (W, D) axis.
    pwd_np = np.zeros((P2, WD), dtype=np.float32)
    for iw, (ws, we) in enumerate(w_bounds):
        for idd, (ds, de) in enumerate(d_bounds):
            q = iw * P + idd
            for w in range(ws, we):
                pwd_np[q, w * D + ds:w * D + de] = 1.0
    pwd = jnp.asarray(pwd_np, dtype=x.dtype)       # 0/1 is exact in bf16 / f32

    # ---- channel-chunk tiling: keep each input block a few MiB so the pipeline
    # double-buffers and stays far below v7x's 64 MiB VMEM. Cblk must divide C
    # and be a multiple of 8 (or equal C) so the output BlockSpec stays legal.
    itemsize = np.dtype(x.dtype).itemsize
    per_channel = H * WD * itemsize
    cands = [d for d in range(1, C + 1)
             if C % d == 0 and (d == C or d % 8 == 0)
             and d * per_channel <= block_target_bytes]
    c_blk = max(cands) if cands else C
    # TODO(synk): add H-slab grid tiling for volumes where even one channel
    # exceeds the VMEM budget (needs accumulation over an "arbitrary" axis).
    grid = (B, C // c_blk)

    in_block = pl.BlockSpec((None, c_blk, H, WD), lambda b, c: (b, c, 0, 0))
    aux_block = pl.BlockSpec((P2, WD), lambda b, c: (0, 0))
    out_spec = pl.BlockSpec((None, c_blk, P3), lambda b, c: (b, c, 0))
    out_shape = jax.ShapeDtypeStruct((B, C, P3), x.dtype)

    in_bytes = x.size * itemsize
    out_bytes = B * C * P3 * itemsize
    vmem_limit = 2 * (_padded_bytes((c_blk, H, WD), x.dtype)
                      + _padded_bytes((P2, WD), x.dtype)
                      + _padded_bytes((1, P3), jnp.float32)
                      + _padded_bytes((c_blk, P3), x.dtype)) + (4 << 20)
    vmem_limit = int(min(max(vmem_limit, 32 << 20), 64 << 20))

    if mode == "avg":
        scale_np = np.zeros((1, P3), dtype=np.float32)
        for ih, (hs, he) in enumerate(h_bounds):
            for iw, (ws, we) in enumerate(w_bounds):
                for idd, (ds, de) in enumerate(d_bounds):
                    scale_np[0, ih * P2 + iw * P + idd] = 1.0 / (
                        (he - hs) * (we - ws) * (de - ds))
        scale = jnp.asarray(scale_np)

        kernel = functools.partial(_avg_kernel, h_bounds=tuple(h_bounds), patch=P)
        in_specs = [in_block, aux_block, pl.BlockSpec((1, P3), lambda b, c: (0, 0))]
        args = (x4, pwd, scale)
        flops = 2 * B * C * H * WD * P2 + B * C * H * P2 + B * C * P3
        bytes_accessed = in_bytes + out_bytes + pwd_np.nbytes + scale_np.nbytes
    else:
        kernel = functools.partial(_max_kernel, h_bounds=tuple(h_bounds), patch=P)
        in_specs = [in_block, aux_block]
        args = (x4, pwd)
        flops = 2 * B * C * H * WD
        bytes_accessed = in_bytes + out_bytes + pwd_np.nbytes

    pooled = pl.pallas_call(
        kernel,
        out_shape=out_shape,
        grid_spec=pltpu.PrefetchScalarGridSpec(
            num_scalar_prefetch=0,
            grid=grid,
            in_specs=in_specs,
            out_specs=out_spec,
        ),
        compiler_params=pltpu.CompilerParams(
            dimension_semantics=("parallel", "parallel"),
            vmem_limit_bytes=vmem_limit,
        ),
        cost_estimate=pl.CostEstimate(
            flops=int(flops), transcendentals=0,
            bytes_accessed=int(bytes_accessed)),
    )(*args)

    # (B, C, P**3) -> (B, P**3, C)   == einops 'B C H W D -> B (H W D) C'
    return jnp.transpose(pooled, (0, 2, 1))


def _reference(x, patch, mode="avg"):
    """Pure-JAX reference reproducing PyTorch adaptive pool + rearrange."""
    B, C, H, W, D = x.shape
    hb = _adaptive_bounds(H, patch)
    wb = _adaptive_bounds(W, patch)
    db = _adaptive_bounds(D, patch)
    rows = []
    for (hs, he) in hb:
        for (ws, we) in wb:
            for (ds, de) in db:
                win = x[:, :, hs:he, ws:we, ds:de]
                if mode == "avg":
                    rows.append(jnp.mean(win.astype(jnp.float32), axis=(2, 3, 4)))
                else:
                    rows.append(jnp.max(win, axis=(2, 3, 4)))
    return jnp.stack(rows, axis=1).astype(x.dtype)  # (B, patch**3, C)


if __name__ == "__main__":
    key = jax.random.PRNGKey(0)
    B, C, H, W, D = 2, 4, 16, 16, 16
    x = jax.random.normal(key, (B, C, H, W, D), dtype=jnp.float32)

    # (mode, patch): patch=3 exercises overlapping adaptive windows (16 % 3 != 0).
    for mode, patch in (("avg", 2), ("avg", 3), ("max", 2)):
        out = jax.block_until_ready(pool_embedding(x, patch=patch, mode=mode))
        assert out.shape == (B, patch ** 3, C), (mode, patch, out.shape)
        ref = _reference(x, patch, mode=mode)
        if mode == "avg":
            # f32 matmuls on the MXU may use bf16 multi-pass decomposition
            # (implementation-defined precision); pooled values are O(0.05),
            # so a 2e-3 absolute tolerance is still a strong structural check.
            ok = bool(jnp.allclose(out, ref, atol=2e-3, rtol=1e-2))
        else:
            ok = bool(jnp.allclose(out, ref, atol=1e-6, rtol=1e-6))
        assert ok, f"mismatch vs reference for mode={mode}, patch={patch}"

    print("KERNEL_OK")
</pallas_src>

<mosaic_0001>
module attributes {stable_mosaic.version = 11 : i64} {
  func.func @_avg_kernel(%arg0: i32, %arg1: i32, %arg2: memref<1x4x16x256xf32, #tpu.memory_space<vmem>>, %arg3: memref<4x256xf32, #tpu.memory_space<vmem>>, %arg4: memref<1x8xf32, #tpu.memory_space<vmem>>, %arg5: memref<1x4x8xf32, #tpu.memory_space<vmem>>) attributes {dimension_semantics = [#tpu.dimension_semantics<parallel>, #tpu.dimension_semantics<parallel>], iteration_bounds = array<i64: 2, 1>, scalar_prefetch = 0 : i64, scratch_operands = 0 : i64, tpu.core_type = #tpu.core_type<tc>, window_params = [{transform_indices = @transform_0, window_bounds = array<i64: 1, 4, 16, 256>}, {pipeline_mode = #tpu.pipeline_mode<synchronous>, transform_indices = @transform_1, window_bounds = array<i64: 4, 256>}, {pipeline_mode = #tpu.pipeline_mode<synchronous>, transform_indices = @transform_2, window_bounds = array<i64: 1, 8>}, {transform_indices = @transform_3, window_bounds = array<i64: 1, 4, 8>}]} {
    %c0 = arith.constant 0 : index
    %c0_0 = arith.constant 0 : index
    %c0_1 = arith.constant 0 : index
    %c0_2 = arith.constant 0 : index
    %0 = vector.load %arg2[%c0, %c0_0, %c0_1, %c0_2] : memref<1x4x16x256xf32, #tpu.memory_space<vmem>>, vector<1x4x16x256xf32>
    %1 = vector.shape_cast %0 : vector<1x4x16x256xf32> to vector<4x16x256xf32>
    %2 = vector.shape_cast %1 : vector<4x16x256xf32> to vector<64x256xf32>
    %c0_3 = arith.constant 0 : index
    %c0_4 = arith.constant 0 : index
    %3 = vector.load %arg3[%c0_3, %c0_4] : memref<4x256xf32, #tpu.memory_space<vmem>>, vector<4x256xf32>
    %cst = arith.constant dense<0.000000e+00> : vector<64x4xf32>
    %4 = tpu.matmul %2, %3, %cst {dimension_numbers = #tpu.dot_dimension_numbers<[1], [1], [0], [0], [0, 0, 1, 0], [], []>} : vector<64x256xf32>, vector<4x256xf32>, vector<64x4xf32> -> vector<64x4xf32>
    %5 = vector.shape_cast %4 : vector<64x4xf32> to vector<4x16x4xf32>
    %6 = vector.extract_strided_slice %5 {offsets = [0, 0, 0], sizes = [4, 8, 4], strides = [1, 1, 1]} : vector<4x16x4xf32> to vector<4x8x4xf32>
    %cst_5 = arith.constant dense<0.000000e+00> : vector<4x4xf32>
    %7 = vector.multi_reduction <add>, %6, %cst_5 [1] : vector<4x8x4xf32> to vector<4x4xf32>
    %8 = vector.extract_strided_slice %5 {offsets = [0, 8, 0], sizes = [4, 8, 4], strides = [1, 1, 1]} : vector<4x16x4xf32> to vector<4x8x4xf32>
    %cst_6 = arith.constant dense<0.000000e+00> : vector<4x4xf32>
    %9 = vector.multi_reduction <add>, %8, %cst_6 [1] : vector<4x8x4xf32> to vector<4x4xf32>
    %10 = tpu.concatenate %7, %9 in 1 : vector<4x4xf32>, vector<4x4xf32> -> vector<4x8xf32>
    %c0_7 = arith.constant 0 : index
    %c0_8 = arith.constant 0 : index
    %11 = vector.load %arg4[%c0_7, %c0_8] : memref<1x8xf32, #tpu.memory_space<vmem>>, vector<1x8xf32>
    %12 = vector.broadcast %11 : vector<1x8xf32> to vector<4x8xf32>
    %13 = arith.mulf %10, %12 : vector<4x8xf32>
    %c0_9 = arith.constant 0 : index
    %c0_10 = arith.constant 0 : index
    %c0_11 = arith.constant 0 : index
    %14 = vector.load %arg5[%c0_9, %c0_10, %c0_11] : memref<1x4x8xf32, #tpu.memory_space<vmem>>, vector<1x4x8xf32>
    %15 = vector.shape_cast %14 : vector<1x4x8xf32> to vector<4x8xf32>
    %16 = vector.shape_cast %13 : vector<4x8xf32> to vector<1x4x8xf32>
    tpu.vector_store %arg5[%c0_9, %c0_10, %c0_11], %16 {strides = array<i32>} : memref<1x4x8xf32, #tpu.memory_space<vmem>>, vector<1x4x8xf32>,
    return
  }
  func.func @transform_0(%arg0: i32, %arg1: i32) -> (i32, i32, i32, i32) {
    %c0_i32 = arith.constant 0 : i32
    %c0_i32_0 = arith.constant 0 : i32
    %c0_i32_1 = arith.constant 0 : i32
    return %arg0, %arg1, %c0_i32, %c0_i32_0 : i32, i32, i32, i32
  }
  func.func @transform_1(%arg0: i32, %arg1: i32) -> (i32, i32) {
    %c0_i32 = arith.constant 0 : i32
    %c0_i32_0 = arith.constant 0 : i32
    %c0_i32_1 = arith.constant 0 : i32
    return %c0_i32, %c0_i32_0 : i32, i32
  }
  func.func @transform_2(%arg0: i32, %arg1: i32) -> (i32, i32) {
    %c0_i32 = arith.constant 0 : i32
    %c0_i32_0 = arith.constant 0 : i32
    %c0_i32_1 = arith.constant 0 : i32
    return %c0_i32, %c0_i32_0 : i32, i32
  }
  func.func @transform_3(%arg0: i32, %arg1: i32) -> (i32, i32, i32) {
    %c0_i32 = arith.constant 0 : i32
    %c0_i32_0 = arith.constant 0 : i32
    return %arg0, %arg1, %c0_i32 : i32, i32, i32
  }
}

</mosaic_0001>

<llo_original>
// kernel: tpu_custom_call.1
$region0: #{tpu_custom_call.1}
  #allocation0 [shape = 'u32[]', space=smem, size = 0x4, offset = 0x4, fixed_abs, tag = 'smem constant byte address 0x4 - core index']
  #allocation1 [shape = 'u32[144,128]{1,0:T(1,128)}', space=vmem, size = 0x12000, scoped, tag = 'internal scratch']
  %s0 = inlined_call_operand.hbm [shape: f32[2,4,16,256], index: 0, kind: input, shape index: {}]
  %s1 = inlined_call_operand.hbm [shape: f32[4,256], index: 1, kind: input, shape index: {}]
  %s2 = inlined_call_operand.vmem [shape: f32[1,8], index: 2, kind: input, shape index: {}]
  %s3 = inlined_call_operand.hbm [shape: f32[2,4,8], index: 3, kind: output, shape index: {}]
  %s4 = sld [smem:[#allocation0]]
  $region53: #{tpu_custom_call.1} parent=0
    _
  %s6 = ssub.s32 1, %s4
  %s7 = scalar_select 0, %s6, %s4
  $region1: #{tpu_custom_call.1} parent=0
    #allocation2 [shape = 'u8[131072]{0}', space=vmem, size = 0x20000, scoped, tag = 'input window, operand 0']
    #allocation3 [shape = 's32[2]{0}', space=sflag, size = 0x8, scoped, tag = 'scoped memory for tpu_custom_call.1']
    #allocation4 [shape = 's32[2]{0}', space=sflag, size = 0x8, scoped, tag = 'scoped memory for tpu_custom_call.1']
    #allocation5 [shape = 'u8[4096]{0}', space=vmem, size = 0x1000, scoped, tag = 'input window, operand 1, single buffered']
    #allocation6 [shape = 's32[1]{0}', space=sflag, size = 0x4, scoped, tag = 'scoped memory for tpu_custom_call.1']
    #allocation7 [shape = 'u8[4096]{0}', space=vmem, size = 0x1000, scoped, tag = 'output window, operand 0']
    %8 = vsyncpa [#allocation3], 0
    %s9 = scalar_lea.sflag [#allocation3], 1
    %10 = vsyncpa %s9, 0
    %11 = vsyncpa [#allocation6], 0
    %12 = vsyncpa [#allocation4], 0
    %s13 = scalar_lea.sflag [#allocation4], 1
    %14 = vsyncpa %s13, 0
    loop: start=0, step=1, limit=4
    $region2: #{tpu_custom_call.1} parent=1 // loop_pre_header
      _
    $region3: #{tpu_custom_call.1} parent=1 // loop_header
      %s16 = sphi 0, %s20
      %p17 = scmp.ge.s32.totalorder %s16, 4
      %s23 = sphi 0, %s35
      %s24 = sphi 0, %s31
      %s25 = sphi 0, %s23
      %s26 = sphi 0, %s24
      %s27 = sphi 0, %s25
      %s28 = sphi 0, %s26
      %s40 = sphi 0, %s42
      %s43 = sphi 0, %s40
      %s44 = sphi 0, %s43
      %s60 = sphi 0, %s44
      %s64 = sphi 0, %s64
      %s66 = sphi 0, %s64
      %s67 = sphi 0, %s66
      %s81 = sphi 0, %s67
      %s85 = sphi 0, %s85
      %s87 = sphi 0, %s85
      %s88 = sphi 0, %s87
      %s102 = sphi 0, %s88
      %s110 = sphi 0, %s112
      %s113 = sphi 0, %s110
      %s114 = sphi 0, %s113
      %s130 = sphi 0, %s114
    $region4: #{tpu_custom_call.1} parent=1 // loop_header_branch
      %19 = sbr.rel (%p17) target = $region8
    $region5: #{tpu_custom_call.1} parent=1 // loop_body
      %s21 = ssub.s32 %s16, 1
      %s22 = ssub.s32 %s16, 2
      %s29 = sadd.s32 1, %s24
      %p30 = scmp.ge.s32.totalorder %s29, 1
      %s31 = scalar_select %p30, 0, %s29
      %s32 = sadd.s32 1, %s23
      %s33 = scalar_select %p30, %s32, %s23
      %p34 = scmp.ge.s32.totalorder %s33, 2
      %s35 = scalar_select %p34, 0, %s33
      %s36 = ssub.s32 %s23, %s35
      %s37 = ssub.s32 %s24, %s31
      %s38 = sor.u32 %s36, %s37
      %p39 = scmp.eq.s32.totalorder %s38, 0
      %s41 = sadd.s32 %s40, 1
      %s42 = scalar_select %p39, %s40, %s41
      %p45 = pneg %p39
      %p46 = scmp.eq.s32.totalorder %s16, 1
      %p47 = por %p45, %p46
      %p48 = scmp.ne.s32.totalorder %s40, %s43
      %p49 = scmp.eq.s32.totalorder %s16, 0
      %p50 = por %p48, %p49
      %p51 = scmp.ne.s32.totalorder %s40, %s43
      %p52 = scmp.eq.s32.totalorder %s21, 1
      %p53 = por %p51, %p52
      %p54 = scmp.ne.s32.totalorder %s43, %s44
      %p55 = scmp.eq.s32.totalorder %s21, 0
      %p56 = por %p54, %p55
      %p57 = scmp.ne.s32.totalorder %s43, %s44
      %p58 = scmp.eq.s32.totalorder %s22, 1
      %p59 = por %p57, %p58
      %p61 = scmp.ne.s32.totalorder %s44, %s60
      %p62 = scmp.eq.s32.totalorder %s22, 0
      %p63 = por %p61, %p62
      %s65 = sadd.s32 %s64, 1
      %p68 = scmp.eq.s32.totalorder %s16, 1
      %p69 = scmp.ne.s32.totalorder %s64, %s66
      %p70 = scmp.eq.s32.totalorder %s16, 0
      %p71 = por %p69, %p70
      %p72 = scmp.ne.s32.totalorder %s64, %s66
      %p73 = scmp.eq.s32.totalorder %s21, 1
      %p74 = por %p72, %p73
      %p75 = scmp.ne.s32.totalorder %s66, %s67
      %p76 = scmp.eq.s32.totalorder %s21, 0
      %p77 = por %p75, %p76
      %p78 = scmp.ne.s32.totalorder %s66, %s67
      %p79 = scmp.eq.s32.totalorder %s22, 1
      %p80 = por %p78, %p79
      %p82 = scmp.ne.s32.totalorder %s67, %s81
      %p83 = scmp.eq.s32.totalorder %s22, 0
      %p84 = por %p82, %p83
      %s86 = sadd.s32 %s85, 1
      %p89 = scmp.eq.s32.totalorder %s16, 1
      %p90 = scmp.ne.s32.totalorder %s85, %s87
      %p91 = scmp.eq.s32.totalorder %s16, 0
      %p92 = por %p90, %p91
      %p93 = scmp.ne.s32.totalorder %s85, %s87
      %p94 = scmp.eq.s32.totalorder %s21, 1
      %p95 = por %p93, %p94
      %p96 = scmp.ne.s32.totalorder %s87, %s88
      %p97 = scmp.eq.s32.totalorder %s21, 0
      %p98 = por %p96, %p97
      %p99 = scmp.ne.s32.totalorder %s87, %s88
      %p100 = scmp.eq.s32.totalorder %s22, 1
      %p101 = por %p99, %p100
      %p103 = scmp.ne.s32.totalorder %s88, %s102
      %p104 = scmp.eq.s32.totalorder %s22, 0
      %p105 = por %p103, %p104
      %s106 = ssub.s32 %s23, %s35
      %s107 = ssub.s32 %s24, %s31
      %s108 = sor.u32 %s106, %s107
      %p109 = scmp.eq.s32.totalorder %s108, 0
      %s111 = sadd.s32 %s110, 1
      %s112 = scalar_select %p109, %s110, %s111
      %p115 = pneg %p109
      %p116 = scmp.eq.s32.totalorder %s16, 1
      %p117 = por %p115, %p116
      %p118 = scmp.ne.s32.totalorder %s110, %s113
      %p119 = scmp.eq.s32.totalorder %s16, 0
      %p120 = por %p118, %p119
      %p121 = scmp.ne.s32.totalorder %s110, %s113
      %p122 = scmp.eq.s32.totalorder %s21, 1
      %p123 = por %p121, %p122
      %p124 = scmp.ne.s32.totalorder %s113, %s114
      %p125 = scmp.eq.s32.totalorder %s21, 0
      %p126 = por %p124, %p125
      %p127 = scmp.ne.s32.totalorder %s113, %s114
      %p128 = scmp.eq.s32.totalorder %s22, 1
      %p129 = por %p127, %p128
      %p131 = scmp.ne.s32.totalorder %s114, %s130
      %p132 = scmp.eq.s32.totalorder %s22, 0
      %p133 = por %p131, %p132
      %p134 = scmp.le.s32.totalorder 1, %s16
      %p135 = scmp.lt.s32.totalorder %s16, 3
      %p136 = pnand %p134, %p135
      %p137 = pneg %p136
      // Predicated region
      $region9: #{tpu_custom_call.1} parent=5 // pred_check
        _
      $region10: #{tpu_custom_call.1} parent=5 // pred_check_branch
        %139 = sbr.rel (%p136) target = $region12
      $region11: #{tpu_custom_call.1} parent=5 // pred_region
        %s140 = ssub.s32 %s16, 1
        // Predicated region
        $region13: #{tpu_custom_call.1} parent=11 // pred_check
          %p141 = pneg %p77
        $region14: #{tpu_custom_call.1} parent=11 // pred_check_branch
          %143 = sbr.rel (%p141) target = $region16
        $region15: #{tpu_custom_call.1} parent=11 // pred_region
          %s145 = ssub.s32 128, 128
          %146 = vsyncadd [#allocation6], %s145
          %s148 = sshll.u32 [#allocation5], 4
          %s149 = int_to_ptr.vmem [resolvable:$true] %s148
          %151 = dma.hbm_to_vmem [thread:$0]  %s1, 128, %s149, [#allocation6]
        $region16: #{tpu_custom_call.1} parent=11 // pred_fallthru
          _
        // Predicated region
        $region17: #{tpu_custom_call.1} parent=11 // pred_check
          %p152 = pneg %p98
        $region18: #{tpu_custom_call.1} parent=11 // pred_check_branch
          %154 = sbr.rel (%p152) target = $region20
        $region19: #{tpu_custom_call.1} parent=11 // pred_region
          _
        $region20: #{tpu_custom_call.1} parent=11 // pred_fallthru
          _
      $region12: #{tpu_custom_call.1} parent=5 // pred_fallthru
        _
      %p155 = scmp.lt.s32.totalorder %s16, 2
      // Predicated region
      $region21: #{tpu_custom_call.1} parent=5 // pred_check
        %p156 = pneg %p155
      $region22: #{tpu_custom_call.1} parent=5 // pred_check_branch
        %158 = sbr.rel (%p156) target = $region24
      $region23: #{tpu_custom_call.1} parent=5 // pred_region
        // Predicated region
        $region25: #{tpu_custom_call.1} parent=23 // pred_check
          %p159 = pneg %p50
        $region26: #{tpu_custom_call.1} parent=23 // pred_check_branch
          %161 = sbr.rel (%p159) target = $region28
        $region27: #{tpu_custom_call.1} parent=23 // pred_region
          %s162 = sand.u32 %s40, 1
          %s163 = scalar_lea.sflag [#allocation3], %s162
          %s164 = sand.u32 %s40, 1
          %s165 = smul.addr %s164, 128
          %s166 = scalar_lea.vmem [#allocation2], %s165
          %s167 = smul.u32 4, %s24
          %s169 = ssub.s32 2048, 2048
          %170 = vsyncadd %s163, %s169
          %s171 = smul.addr %s167, 4
          %s172 = smul.addr %s23, 16
          %s173 = sadd.s32 %s171, %s172
          %s174 = smul.addr %s173, 128
          %s175 = scalar_lea.hbm %s0, %s174
          %s176 = sshll.u32 %s166, 4
          %s177 = int_to_ptr.vmem [resolvable:$true] %s176
          %182 = dma.hbm_to_vmem [thread:$0]  %s175, 2048, %s177, %s163, 256, 256, 16
        $region28: #{tpu_custom_call.1} parent=23 // pred_fallthru
          _
      $region24: #{tpu_custom_call.1} parent=5 // pred_fallthru
        _
      %p183 = scmp.le.s32.totalorder 1, %s16
      %p184 = scmp.lt.s32.totalorder %s16, 3
      %p185 = pnand %p183, %p184
      %p186 = pneg %p185
      // Predicated region
      $region29: #{tpu_custom_call.1} parent=5 // pred_check
        _
      $region30: #{tpu_custom_call.1} parent=5 // pred_check_branch
        %188 = sbr.rel (%p185) target = $region32
      $region31: #{tpu_custom_call.1} parent=5 // pred_region
        %s189 = ssub.s32 %s16, 1
        %s190 = sand.u32 %s43, 1
        %s191 = scalar_lea.sflag [#allocation3], %s190
        %s192 = sand.u32 %s43, 1
        %s193 = smul.addr %s192, 128
        %s194 = scalar_lea.vmem [#allocation2], %s193
        // Predicated region
        $region33: #{tpu_custom_call.1} parent=31 // pred_check
          %p195 = pneg %p56
        $region34: #{tpu_custom_call.1} parent=31 // pred_check_branch
          %197 = sbr.rel (%p195) target = $region36
        $region35: #{tpu_custom_call.1} parent=31 // pred_region
          %198 = dma.done %s191, 2048
        $region36: #{tpu_custom_call.1} parent=31 // pred_fallthru
          _
        // Predicated region
        $region37: #{tpu_custom_call.1} parent=31 // pred_check
          %p199 = pneg %p77
        $region38: #{tpu_custom_call.1} parent=31 // pred_check_branch
          %201 = sbr.rel (%p199) target = $region40
        $region39: #{tpu_custom_call.1} parent=31 // pred_region
          %202 = dma.done [#allocation6], 128
        $region40: #{tpu_custom_call.1} parent=31 // pred_fallthru
          _
        %s203 = sand.u32 %s43, 1
        %s204 = scalar_lea.sflag [#allocation3], %s203
        %s205 = sand.u32 %s43, 1
        %s206 = smul.addr %s205, 128
        %s207 = scalar_lea.vmem [#allocation2], %s206
        %p208 = pneg %p56
        %p209 = pneg %p53
        %p210 = pneg %p77
        %p211 = pneg %p74
        %p212 = pneg %p98
        %p213 = pneg %p95
        %p214 = pneg %p126
        %p215 = pneg %p123
        %s216 = sand.u32 %s113, 1
        %s217 = scalar_lea.sflag [#allocation4], %s216
        %s218 = sand.u32 %s113, 1
        %s219 = smul.addr %s218, 4
        %s220 = scalar_lea.vmem [#allocation7], %s219
        %s221 = smul.u32 4, %s26
        %v222 = vld [vmem:[%s194] sm:$0xff]
        %v223 = vld [vmem:[%s194 + $0x8] sm:$0xff]
        %v224 = vld [vmem:[%s194 + $0x10] sm:$0xff]
        %v225 = vld [vmem:[%s194 + $0x18] sm:$0xff]
        %v226 = vld [vmem:[%s194 + $0x20] sm:$0xff]
        %v227 = vld [vmem:[%s194 + $0x28] sm:$0xff]
        %v228 = vld [vmem:[%s194 + $0x30] sm:$0xff]
        %v229 = vld [vmem:[%s194 + $0x38] sm:$0xff]
        %v230 = vld [vmem:[%s194 + $0x40] sm:$0xff]
        %v231 = vld [vmem:[%s194 + $0x48] sm:$0xff]
        %v232 = vld [vmem:[%s194 + $0x50] sm:$0xff]
        %v233 = vld [vmem:[%s194 + $0x58] sm:$0xff]
        %v234 = vld [vmem:[%s194 + $0x60] sm:$0xff]
        %v235 = vld [vmem:[%s194 + $0x68] sm:$0xff]
        %v236 = vld [vmem:[%s194 + $0x70] sm:$0xff]
        %v237 = vld [vmem:[%s194 + $0x78] sm:$0xff]
        %v238 = vld [vmem:[#allocation5] sm:$0xff]
        %v240 = vcombine.high %v238, %v238
        %242 = vmatprep.subr.mxu0 0.0
        %243 = vmatpush1.xpose.msra.mxu0 0.0
        %244 = vmatprep.subr.mxu0 0.0
        %245 = vmatpush1.xpose.msra.mxu0 0.0
        %246 = vmatprep.subr.mxu0 0.0
        %247 = vmatpush1.xpose.msra.mxu0 0.0
        %248 = vmatprep.subr.mxu0 0.0
        %249 = vmatpush1.xpose.msra.mxu0 0.0
        %250 = vmatprep.subr.mxu0 0.0
        %251 = vmatpush1.xpose.msra.mxu0 0.0
        %252 = vmatprep.subr.mxu0 0.0
        %253 = vmatpush1.xpose.msra.mxu0 0.0
        %254 = vmatprep.subr.mxu0 0.0
        %255 = vmatpush1.xpose.msra.mxu0 0.0
        %256 = vmatprep.subr.mxu0 0.0
        %257 = vmatpush1.xpose.msra.mxu0 0.0
        %258 = vmatprep.subr.mxu0 0.0
        %259 = vmatpush1.xpose.msra.mxu0 0.0
        %260 = vmatprep.subr.mxu0 0.0
        %261 = vmatpush1.xpose.msra.mxu0 0.0
        %262 = vmatprep.subr.mxu0 0.0
        %263 = vmatpush1.xpose.msra.mxu0 0.0
        %264 = vmatprep.subr.mxu0 0.0
        %265 = vmatpush1.xpose.msra.mxu0 0.0
        %266 = vmatprep.subr.mxu0 0.0
        %267 = vmatpush1.xpose.msra.mxu0 0.0
        %268 = vmatprep.subr.mxu0 0.0
        %269 = vmatpush1.xpose.msra.mxu0 0.0
        %270 = vmatprep.subr.mxu0 0.0
        %271 = vmatpush1.xpose.msra.mxu0 0.0
        %272 = vmatprep.subr.mxu0 %v240
        %273 = vmatpush1.xpose.msra.mxu0 %v238
        %274 = vmatprep.subr.mxu0 0.0
        %275 = vmatpush2.xpose.msra.mxu0 0.0
        %276 = vmatprep.subr.mxu0 0.0
        %277 = vmatpush2.xpose.msra.mxu0 0.0
        %278 = vmatprep.subr.mxu0 0.0
        %279 = vmatpush2.xpose.msra.mxu0 0.0
        %280 = vmatprep.subr.mxu0 0.0
        %281 = vmatpush2.xpose.msra.mxu0 0.0
        %282 = vmatprep.subr.mxu0 0.0
        %283 = vmatpush2.xpose.msra.mxu0 0.0
        %284 = vmatprep.subr.mxu0 0.0
        %285 = vmatpush2.xpose.msra.mxu0 0.0
        %286 = vmatprep.subr.mxu0 0.0
        %287 = vmatpush2.xpose.msra.mxu0 0.0
        %288 = vmatprep.subr.mxu0 0.0
        %289 = vmatpush2.xpose.msra.mxu0 0.0
        %290 = vmatprep.subr.mxu0 0.0
        %291 = vmatpush2.xpose.msra.mxu0 0.0
        %292 = vmatprep.subr.mxu0 0.0
        %293 = vmatpush2.xpose.msra.mxu0 0.0
        %294 = vmatprep.subr.mxu0 0.0
        %295 = vmatpush2.xpose.msra.mxu0 0.0
        %296 = vmatprep.subr.mxu0 0.0
        %297 = vmatpush2.xpose.msra.mxu0 0.0
        %298 = vmatprep.subr.mxu0 0.0
        %299 = vmatpush2.xpose.msra.mxu0 0.0
        %300 = vmatprep.subr.mxu0 0.0
        %301 = vmatpush2.xpose.msra.mxu0 0.0
        %302 = vmatprep.subr.mxu0 0.0
        %303 = vmatpush2.xpose.msra.mxu0 0.0
        %304 = vmatprep.subr.mxu0 0.0
        %305 = vmatpush2.xpose.msra.mxu0 0.0
        %306 = vmatprep.mubr.f32.mxu0 %v223
        %307 = vmatmul.mubr.f32.gmra.mxu0 %v222
        %v308 = vpop.f32.mrf.mxu0
        %v309 = vadd.f32 0.0, %v308
        %v310 = vpop.f32.mrf.mxu0
        %311 = vmatprep.mubr.f32.mxu0 %v225
        %312 = vmatmul.mubr.f32.gmra.mxu0 %v224
        %v313 = vpop.f32.mrf.mxu0
        %v314 = vadd.f32 0.0, %v313
        %v315 = vpop.f32.mrf.mxu0
        %316 = vmatprep.mubr.f32.mxu0 %v227
        %317 = vmatmul.mubr.f32.gmra.mxu0 %v226
        %v318 = vpop.f32.mrf.mxu0
        %v319 = vadd.f32 0.0, %v318
        %v320 = vpop.f32.mrf.mxu0
        %321 = vmatprep.mubr.f32.mxu0 %v229
        %322 = vmatmul.mubr.f32.gmra.mxu0 %v228
        %v323 = vpop.f32.mrf.mxu0
        %v324 = vadd.f32 0.0, %v323
        %v325 = vpop.f32.mrf.mxu0
        %326 = vmatprep.mubr.f32.mxu0 %v231
        %327 = vmatmul.mubr.f32.gmra.mxu0 %v230
        %v328 = vpop.f32.mrf.mxu0
        %v329 = vadd.f32 0.0, %v328
        %v330 = vpop.f32.mrf.mxu0
        %331 = vmatprep.mubr.f32.mxu0 %v233
        %332 = vmatmul.mubr.f32.gmra.mxu0 %v232
        %v333 = vpop.f32.mrf.mxu0
        %v334 = vadd.f32 0.0, %v333
        %v335 = vpop.f32.mrf.mxu0
        %336 = vmatprep.mubr.f32.mxu0 %v235
        %337 = vmatmul.mubr.f32.gmra.mxu0 %v234
        %v338 = vpop.f32.mrf.mxu0
        %v339 = vadd.f32 0.0, %v338
        %v340 = vpop.f32.mrf.mxu0
        %341 = vmatprep.mubr.f32.mxu0 %v237
        %342 = vmatmul.mubr.f32.gmra.mxu0 %v236
        %v343 = vpop.f32.mrf.mxu0
        %v344 = vadd.f32 0.0, %v343
        %v345 = vpop.f32.mrf.mxu0
        %346 = vdwg.mxu0
        %vm347 = vcmask 31744
        %v348 = vsel %vm347, %v309, 0.0
        %v349 = vrot.slane %v348, 4
        %v350 = vadd.f32 %v348, %v349
        %v351 = vrot.slane %v350, 2
        %v352 = vadd.f32 %v350, %v351
        %v353 = vrot.slane %v352, 1
        %v354 = vadd.f32 %v352, %v353
        %v355 = vsel %vm347, %v319, 0.0
        %v356 = vrot.slane %v355, 4
        %v357 = vadd.f32 %v355, %v356
        %v358 = vrot.slane %v357, 2
        %v359 = vadd.f32 %v357, %v358
        %v360 = vrot.slane %v359, 1
        %v361 = vadd.f32 %v359, %v360
        %v362 = vsel %vm347, %v329, 0.0
        %v363 = vrot.slane %v362, 4
        %v364 = vadd.f32 %v362, %v363
        %v365 = vrot.slane %v364, 2
        %v366 = vadd.f32 %v364, %v365
        %v367 = vrot.slane %v366, 1
        %v368 = vadd.f32 %v366, %v367
        %v369 = vsel %vm347, %v339, 0.0
        %v370 = vrot.slane %v369, 4
        %v371 = vadd.f32 %v369, %v370
        %v372 = vrot.slane %v371, 2
        %v373 = vadd.f32 %v371, %v372
        %v374 = vrot.slane %v373, 1
        %v375 = vadd.f32 %v373, %v374
        %v376 = vsel %vm347, %v314, 0.0
        %v377 = vrot.slane %v376, 4
        %v378 = vadd.f32 %v376, %v377
        %v379 = vrot.slane %v378, 2
        %v380 = vadd.f32 %v378, %v379
        %v381 = vrot.slane %v380, 1
        %v382 = vadd.f32 %v380, %v381
        %v383 = vsel %vm347, %v324, 0.0
        %v384 = vrot.slane %v383, 4
        %v385 = vadd.f32 %v383, %v384
        %v386 = vrot.slane %v385, 2
        %v387 = vadd.f32 %v385, %v386
        %v388 = vrot.slane %v387, 1
        %v389 = vadd.f32 %v387, %v388
        %v390 = vsel %vm347, %v334, 0.0
        %v391 = vrot.slane %v390, 4
        %v392 = vadd.f32 %v390, %v391
        %v393 = vrot.slane %v392, 2
        %v394 = vadd.f32 %v392, %v393
        %v395 = vrot.slane %v394, 1
        %v396 = vadd.f32 %v394, %v395
        %v397 = vsel %vm347, %v344, 0.0
        %v398 = vrot.slane %v397, 4
        %v399 = vadd.f32 %v397, %v398
        %v400 = vrot.slane %v399, 2
        %v401 = vadd.f32 %v399, %v400
        %v402 = vrot.slane %v401, 1
        %v403 = vadd.f32 %v401, %v402
        %vm408 = vcmask 1041409
        %v409 = vsel %vm408, %v361, %v354
        %vm410 = vcmask 1042434
        %v411 = vsel %vm410, %v368, %v409
        %vm412 = vcmask 1043459
        %v413 = vsel %vm412, %v375, %v411
        %v419 = vsel %vm408, %v389, %v382
        %v420 = vsel %vm410, %v396, %v419
        %v421 = vsel %vm412, %v403, %v420
        %422 = vrot.lane.b32.xlu0 %v421, 4
        %v423 = vpop.permute.xlu0 %422
        %v425 = vsel %vm347, %v413, %v423
        %v426 = vld [vmem:[%s2] sm:$0x1]
        %v428 = vlaneseq
        %v429 = vshrl.u32 %v428, 7
        %v430 = vsub.s32 0, %v429
        %v431 = vrot.slane %v426, %v430
        %v433 = vmul.f32 %v425, %v431
        %vm434 = vcmask 60416
        %435 = vst.msk [vmem:[%s220] sm:$0xf] %vm434, %v433
        %s436 = sand.u32 %s113, 1
        %s437 = scalar_lea.sflag [#allocation4], %s436
        %s438 = sand.u32 %s113, 1
        %s439 = smul.addr %s438, 4
        %s440 = scalar_lea.vmem [#allocation7], %s439
        // Predicated region
        $region41: #{tpu_custom_call.1} parent=31 // pred_check
          %p441 = pneg %p123
        $region42: #{tpu_custom_call.1} parent=31 // pred_check_branch
          %443 = sbr.rel (%p441) target = $region44
        $region43: #{tpu_custom_call.1} parent=31 // pred_region
          %s445 = ssub.s32 64, 64
          %446 = vsyncadd %s437, %s445
          %s447 = sadd.s32 %s26, %s25
          %s448 = smul.addr %s447, 64
          %s449 = scalar_lea.hbm %s3, %s448
          %s451 = sshll.u32 %s440, 4
          %s452 = int_to_ptr.vmem [resolvable:$true] %s451
          %454 = dma.vmem_to_hbm [thread:$0]  %s452, 64, %s449, %s437
        $region44: #{tpu_custom_call.1} parent=31 // pred_fallthru
          _
      $region32: #{tpu_custom_call.1} parent=5 // pred_fallthru
        _
      %p455 = scmp.le.s32.totalorder 2, %s16
      // Predicated region
      $region45: #{tpu_custom_call.1} parent=5 // pred_check
        %p456 = pneg %p455
      $region46: #{tpu_custom_call.1} parent=5 // pred_check_branch
        %458 = sbr.rel (%p456) target = $region48
      $region47: #{tpu_custom_call.1} parent=5 // pred_region
        %s459 = ssub.s32 %s16, 2
        // Predicated region
        $region49: #{tpu_custom_call.1} parent=47 // pred_check
          %p460 = pneg %p129
        $region50: #{tpu_custom_call.1} parent=47 // pred_check_branch
          %462 = sbr.rel (%p460) target = $region52
        $region51: #{tpu_custom_call.1} parent=47 // pred_region
          %s463 = sand.u32 %s114, 1
          %s464 = scalar_lea.sflag [#allocation4], %s463
          %s465 = sand.u32 %s114, 1
          %s466 = smul.addr %s465, 4
          %s467 = scalar_lea.vmem [#allocation7], %s466
          %468 = dma.done %s464, 64
        $region52: #{tpu_custom_call.1} parent=47 // pred_fallthru
          _
      $region48: #{tpu_custom_call.1} parent=5 // pred_fallthru
        _
    $region6: #{tpu_custom_call.1} parent=1 // loop_footer
      %s20 = sadd.s32 1, %s16
    $region7: #{tpu_custom_call.1} parent=1 // loop_footer_branch
      %15 = sbr.rel target = $region3
    $region8: #{tpu_custom_call.1} parent=1 // loop_exit
      _
    %469 = vsyncpa [#allocation3], 1
    %s470 = scalar_lea.sflag [#allocation3], 1
    %471 = vsyncpa %s470, 1
    %472 = vsyncpa [#allocation6], 1
    %473 = vsyncpa [#allocation4], 1
    %s474 = scalar_lea.sflag [#allocation4], 1
    %475 = vsyncpa %s474, 1

</llo_original>
